<compile_context>
chip_gen: v7x
topology: tpu7x:2x2x1
jax: 0.10.0
libtpu: 0.0.40
codegen_flags: <defaults>
</compile_context>

<pallas_src>
import jax
import jax.numpy as jnp
from jax.experimental import pallas as pl
from jax.experimental.pallas import tpu as pltpu


def _downsample_conv_kernel(x_ref, w_ref, sel_ref, o_ref):
    """One (batch, length-tile) grid step.

    x_ref:   (1, Cin, stride*tl)   contiguous full-resolution input window
    w_ref:   (Cout, Cin)           1x1 conv weight (resident across grid steps)
    sel_ref: (stride*lb, lb)       0/1 nearest-downsample selection sub-block
    o_ref:   (1, Cout, tl)         output tile (length on the lane axis)
    """
    win_b, lb = sel_ref.shape            # input / output columns per sub-block
    nb = o_ref.shape[2] // lb            # sub-blocks per tile (static, small)
    w = w_ref[...]                       # hoisted: loaded once per grid step
    sel = sel_ref[...]
    for b in range(nb):                  # static unroll; 128-lane-aligned slices
        xb = x_ref[0, :, b * win_b:(b + 1) * win_b]          # (Cin, stride*lb)
        if win_b == lb:                                       # stride == 1
            xds = xb
        else:
            # Even-column de-interleave on the (otherwise idle) MXU; exact,
            # since each output column is 1*x + 0*rest.
            xds = jnp.dot(xb, sel,
                          preferred_element_type=jnp.float32).astype(xb.dtype)
        # 1x1 conv == channel mixing: (Cout, Cin) @ (Cin, lb).
        yb = jnp.dot(w, xds, preferred_element_type=jnp.float32)   # (Cout, lb)
        o_ref[0, :, b * lb:(b + 1) * lb] = yb.astype(o_ref.dtype)


def downsample(x, weight, *, downsample_rate=0.5):
    """DownSample forward: nearest resize by `downsample_rate`, then 1x1 conv (no bias).

    x:      (N, Cin, L)
    weight: (Cout, Cin, 1) or (Cout, Cin)  -- PyTorch Conv1d weight, bias=False
    returns (N, Cout, floor(L * downsample_rate))
    """
    if weight.ndim == 3:
        assert weight.shape[-1] == 1
        weight = weight[:, :, 0]
    N, Cin, L = x.shape
    Cout, Cin_w = weight.shape
    assert Cin == Cin_w

    stride = int(round(1.0 / downsample_rate))
    assert stride >= 1 and abs(1.0 / downsample_rate - stride) < 1e-6, (
        "only reciprocal-of-integer downsample rates are supported")
    L_out = int(L * downsample_rate)
    assert L_out >= 1
    # TODO(synk): for stride > 2 with L % stride != 0, PyTorch 'nearest' uses
    # floor(l*L/L_out) which can deviate from stride*l; we implement stride*l
    # (exact for stride == 2, the module's default rate of 0.5).
    L_in = stride * L_out
    if L_in != L:
        x = x[:, :, :L_in]          # only when L % stride != 0; tail never read

    # Length tile tl (output columns per grid step) and selection sub-block lb.
    # Multiples of 128 give lane-dense unmasked stores; lb=128 keeps the MXU
    # de-interleave cost linear in tl.  Small shapes use full-extent blocks.
    if L_out >= 128 and L_out % 128 == 0:
        tl = 128
        for cand in (512, 384, 256):
            if L_out % cand == 0:
                tl = cand
                break
        lb = 128
    else:
        tl, lb = L_out, L_out
    win = stride * tl                    # input window length per output tile

    # 0/1 selection matrix: (X_sub @ sel)[:, l] = X_sub[:, stride*l]  (nearest).
    sel = (jnp.arange(stride * lb, dtype=jnp.int32)[:, None]
           == stride * jnp.arange(lb, dtype=jnp.int32)[None, :]).astype(x.dtype)

    grid = (N, L_out // tl)

    itemsize = jnp.dtype(x.dtype).itemsize
    tile_bytes = (2 * (Cin * win + Cout * tl)            # double-buffered I/O
                  + stride * lb * lb + Cout * Cin) * itemsize
    vmem_limit = int(min(64 * 2**20, max(16 * 2**20, 4 * tile_bytes)))

    cost = pl.CostEstimate(
        flops=2 * N * L_out * Cin * (Cout + stride * lb),
        transcendentals=0,
        bytes_accessed=(N * Cin * L_in + Cout * Cin + sel.size
                        + N * Cout * L_out) * itemsize,
    )

    return pl.pallas_call(
        _downsample_conv_kernel,
        grid=grid,
        in_specs=[
            pl.BlockSpec((1, Cin, win), lambda n, j: (n, 0, j)),    # x window
            pl.BlockSpec((Cout, Cin), lambda n, j: (0, 0)),         # conv weight
            pl.BlockSpec((stride * lb, lb), lambda n, j: (0, 0)),   # selection
        ],
        out_specs=pl.BlockSpec((1, Cout, tl), lambda n, j: (n, 0, j)),
        out_shape=jax.ShapeDtypeStruct((N, Cout, L_out), x.dtype),
        compiler_params=pltpu.CompilerParams(
            dimension_semantics=("parallel", "parallel"),
            vmem_limit_bytes=vmem_limit,
        ),
        cost_estimate=cost,
    )(x, weight, sel)


if __name__ == "__main__":
    key = jax.random.PRNGKey(0)
    kx, kw, kx2, kw2 = jax.random.split(key, 4)

    # Case 1: small shapes consistent with the module:
    # batch=2, in_channels=4, out_channels=8, length=16 -> output length 8.
    N, Cin, Cout, L = 2, 4, 8, 16
    x = jax.random.normal(kx, (N, Cin, L), dtype=jnp.float32)
    weight = 0.1 * jax.random.normal(kw, (Cout, Cin, 1), dtype=jnp.float32)
    out = downsample(x, weight, downsample_rate=0.5)
    jax.block_until_ready(out)
    ref = jnp.einsum("oc,ncl->nol", weight[:, :, 0], x[:, :, ::2])
    assert out.shape == ref.shape == (N, Cout, L // 2)
    assert jnp.allclose(out, ref, atol=1e-4, rtol=1e-4), "mismatch vs reference (case 1)"

    # Case 2: exercises the lane-dense, sub-blocked tiling path (L_out = 256).
    N2, Cin2, Cout2, L2 = 2, 8, 4, 512
    x2 = jax.random.normal(kx2, (N2, Cin2, L2), dtype=jnp.float32)
    w2 = 0.1 * jax.random.normal(kw2, (Cout2, Cin2, 1), dtype=jnp.float32)
    out2 = downsample(x2, w2, downsample_rate=0.5)
    jax.block_until_ready(out2)
    ref2 = jnp.einsum("oc,ncl->nol", w2[:, :, 0], x2[:, :, ::2])
    assert out2.shape == ref2.shape == (N2, Cout2, L2 // 2)
    assert jnp.allclose(out2, ref2, atol=1e-4, rtol=1e-4), "mismatch vs reference (case 2)"

    print("KERNEL_OK")
</pallas_src>

<mosaic_0001>
module attributes {stable_mosaic.version = 11 : i64} {
  func.func @_downsample_conv_kernel(%arg0: i32, %arg1: i32, %arg2: memref<1x4x16xf32, #tpu.memory_space<vmem>>, %arg3: memref<8x4xf32, #tpu.memory_space<vmem>>, %arg4: memref<16x8xf32, #tpu.memory_space<vmem>>, %arg5: memref<1x8x8xf32, #tpu.memory_space<vmem>>) attributes {dimension_semantics = [#tpu.dimension_semantics<parallel>, #tpu.dimension_semantics<parallel>], iteration_bounds = array<i64: 2, 1>, scalar_prefetch = 0 : i64, scratch_operands = 0 : i64, tpu.core_type = #tpu.core_type<tc>, window_params = [{transform_indices = @transform_0, window_bounds = array<i64: 1, 4, 16>}, {pipeline_mode = #tpu.pipeline_mode<synchronous>, transform_indices = @transform_1, window_bounds = array<i64: 8, 4>}, {pipeline_mode = #tpu.pipeline_mode<synchronous>, transform_indices = @transform_2, window_bounds = array<i64: 16, 8>}, {transform_indices = @transform_3, window_bounds = array<i64: 1, 8, 8>}]} {
    %c0 = arith.constant 0 : index
    %c0_0 = arith.constant 0 : index
    %0 = vector.load %arg3[%c0, %c0_0] : memref<8x4xf32, #tpu.memory_space<vmem>>, vector<8x4xf32>
    %c0_1 = arith.constant 0 : index
    %c0_2 = arith.constant 0 : index
    %1 = vector.load %arg4[%c0_1, %c0_2] : memref<16x8xf32, #tpu.memory_space<vmem>>, vector<16x8xf32>
    %c0_3 = arith.constant 0 : index
    %c0_4 = arith.constant 0 : index
    %c0_5 = arith.constant 0 : index
    %2 = vector.load %arg2[%c0_3, %c0_4, %c0_5] : memref<1x4x16xf32, #tpu.memory_space<vmem>>, vector<1x4x16xf32>
    %3 = vector.shape_cast %2 : vector<1x4x16xf32> to vector<4x16xf32>
    %cst = arith.constant dense<0.000000e+00> : vector<4x8xf32>
    %4 = tpu.matmul %3, %1, %cst {dimension_numbers = #tpu.dot_dimension_numbers<[1], [0], [0], [1], [0, 0, 1, 1], [], []>} : vector<4x16xf32>, vector<16x8xf32>, vector<4x8xf32> -> vector<4x8xf32>
    %cst_6 = arith.constant dense<0.000000e+00> : vector<8x8xf32>
    %5 = tpu.matmul %0, %4, %cst_6 {dimension_numbers = #tpu.dot_dimension_numbers<[1], [0], [0], [1], [0, 0, 1, 1], [], []>} : vector<8x4xf32>, vector<4x8xf32>, vector<8x8xf32> -> vector<8x8xf32>
    %c0_7 = arith.constant 0 : index
    %c0_8 = arith.constant 0 : index
    %c0_9 = arith.constant 0 : index
    %6 = vector.load %arg5[%c0_7, %c0_8, %c0_9] : memref<1x8x8xf32, #tpu.memory_space<vmem>>, vector<1x8x8xf32>
    %7 = vector.shape_cast %6 : vector<1x8x8xf32> to vector<8x8xf32>
    %8 = vector.shape_cast %5 : vector<8x8xf32> to vector<1x8x8xf32>
    tpu.vector_store %arg5[%c0_7, %c0_8, %c0_9], %8 {strides = array<i32>} : memref<1x8x8xf32, #tpu.memory_space<vmem>>, vector<1x8x8xf32>,
    return
  }
  func.func @transform_0(%arg0: i32, %arg1: i32) -> (i32, i32, i32) {
    %c0_i32 = arith.constant 0 : i32
    %c0_i32_0 = arith.constant 0 : i32
    return %arg0, %c0_i32, %arg1 : i32, i32, i32
  }
  func.func @transform_1(%arg0: i32, %arg1: i32) -> (i32, i32) {
    %c0_i32 = arith.constant 0 : i32
    %c0_i32_0 = arith.constant 0 : i32
    %c0_i32_1 = arith.constant 0 : i32
    return %c0_i32, %c0_i32_0 : i32, i32
  }
  func.func @transform_2(%arg0: i32, %arg1: i32) -> (i32, i32) {
    %c0_i32 = arith.constant 0 : i32
    %c0_i32_0 = arith.constant 0 : i32
    %c0_i32_1 = arith.constant 0 : i32
    return %c0_i32, %c0_i32_0 : i32, i32
  }
  func.func @transform_3(%arg0: i32, %arg1: i32) -> (i32, i32, i32) {
    %c0_i32 = arith.constant 0 : i32
    %c0_i32_0 = arith.constant 0 : i32
    return %arg0, %c0_i32, %arg1 : i32, i32, i32
  }
}

</mosaic_0001>

<llo_original>
// kernel: tpu_custom_call.1
$region0: #{tpu_custom_call.1}
  #allocation0 [shape = 'u32[]', space=smem, size = 0x4, offset = 0x4, fixed_abs, tag = 'smem constant byte address 0x4 - core index']
  #allocation1 [shape = 'u32[144,128]{1,0:T(1,128)}', space=vmem, size = 0x12000, scoped, tag = 'internal scratch']
  %s0 = inlined_call_operand.vmem [shape: f32[2,4,16], index: 0, kind: input, shape index: {}]
  %s1 = inlined_call_operand.vmem [shape: f32[8,4], index: 1, kind: input, shape index: {}]
  %s2 = inlined_call_operand.vmem [shape: f32[16,8], index: 2, kind: input, shape index: {}]
  %s3 = inlined_call_operand.hbm [shape: f32[2,8,8], index: 3, kind: output, shape index: {}]
  %s4 = sld [smem:[#allocation0]]
  $region45: #{tpu_custom_call.1} parent=0
    _
  %s6 = ssub.s32 1, %s4
  %s7 = scalar_select 0, %s6, %s4
  $region1: #{tpu_custom_call.1} parent=0
    #allocation2 [shape = 'u8[8192]{0}', space=vmem, size = 0x2000, scoped, tag = 'output window, operand 0']
    #allocation3 [shape = 's32[2]{0}', space=sflag, size = 0x8, scoped, tag = 'scoped memory for tpu_custom_call.1']
    %8 = vsyncpa [#allocation3], 0
    %s9 = scalar_lea.sflag [#allocation3], 1
    %10 = vsyncpa %s9, 0
    loop: start=0, step=1, limit=4
    $region2: #{tpu_custom_call.1} parent=1 // loop_pre_header
      _
    $region3: #{tpu_custom_call.1} parent=1 // loop_header
      %s12 = sphi 0, %s16
      %p13 = scmp.ge.s32.totalorder %s12, 4
      %s19 = sphi 0, %s31
      %s20 = sphi 0, %s27
      %s21 = sphi 0, %s19
      %s22 = sphi 0, %s20
      %s23 = sphi 0, %s21
      %s24 = sphi 0, %s22
      %s36 = sphi 0, %s38
      %s39 = sphi 0, %s36
      %s40 = sphi 0, %s39
      %s56 = sphi 0, %s40
      %s60 = sphi 0, %s60
      %s62 = sphi 0, %s60
      %s63 = sphi 0, %s62
      %s77 = sphi 0, %s63
      %s81 = sphi 0, %s81
      %s83 = sphi 0, %s81
      %s84 = sphi 0, %s83
      %s98 = sphi 0, %s84
      %s106 = sphi 0, %s108
      %s109 = sphi 0, %s106
      %s110 = sphi 0, %s109
      %s126 = sphi 0, %s110
    $region4: #{tpu_custom_call.1} parent=1 // loop_header_branch
      %15 = sbr.rel (%p13) target = $region8
    $region5: #{tpu_custom_call.1} parent=1 // loop_body
      %s17 = ssub.s32 %s12, 1
      %s18 = ssub.s32 %s12, 2
      %s25 = sadd.s32 1, %s20
      %p26 = scmp.ge.s32.totalorder %s25, 1
      %s27 = scalar_select %p26, 0, %s25
      %s28 = sadd.s32 1, %s19
      %s29 = scalar_select %p26, %s28, %s19
      %p30 = scmp.ge.s32.totalorder %s29, 2
      %s31 = scalar_select %p30, 0, %s29
      %s32 = ssub.s32 %s19, %s31
      %s33 = ssub.s32 %s20, %s27
      %s34 = sor.u32 %s32, %s33
      %p35 = scmp.eq.s32.totalorder %s34, 0
      %s37 = sadd.s32 %s36, 1
      %s38 = scalar_select %p35, %s36, %s37
      %p41 = pneg %p35
      %p42 = scmp.eq.s32.totalorder %s12, 1
      %p43 = por %p41, %p42
      %p44 = scmp.ne.s32.totalorder %s36, %s39
      %p45 = scmp.eq.s32.totalorder %s12, 0
      %p46 = por %p44, %p45
      %p47 = scmp.ne.s32.totalorder %s36, %s39
      %p48 = scmp.eq.s32.totalorder %s17, 1
      %p49 = por %p47, %p48
      %p50 = scmp.ne.s32.totalorder %s39, %s40
      %p51 = scmp.eq.s32.totalorder %s17, 0
      %p52 = por %p50, %p51
      %p53 = scmp.ne.s32.totalorder %s39, %s40
      %p54 = scmp.eq.s32.totalorder %s18, 1
      %p55 = por %p53, %p54
      %p57 = scmp.ne.s32.totalorder %s40, %s56
      %p58 = scmp.eq.s32.totalorder %s18, 0
      %p59 = por %p57, %p58
      %s61 = sadd.s32 %s60, 1
      %p64 = scmp.eq.s32.totalorder %s12, 1
      %p65 = scmp.ne.s32.totalorder %s60, %s62
      %p66 = scmp.eq.s32.totalorder %s12, 0
      %p67 = por %p65, %p66
      %p68 = scmp.ne.s32.totalorder %s60, %s62
      %p69 = scmp.eq.s32.totalorder %s17, 1
      %p70 = por %p68, %p69
      %p71 = scmp.ne.s32.totalorder %s62, %s63
      %p72 = scmp.eq.s32.totalorder %s17, 0
      %p73 = por %p71, %p72
      %p74 = scmp.ne.s32.totalorder %s62, %s63
      %p75 = scmp.eq.s32.totalorder %s18, 1
      %p76 = por %p74, %p75
      %p78 = scmp.ne.s32.totalorder %s63, %s77
      %p79 = scmp.eq.s32.totalorder %s18, 0
      %p80 = por %p78, %p79
      %s82 = sadd.s32 %s81, 1
      %p85 = scmp.eq.s32.totalorder %s12, 1
      %p86 = scmp.ne.s32.totalorder %s81, %s83
      %p87 = scmp.eq.s32.totalorder %s12, 0
      %p88 = por %p86, %p87
      %p89 = scmp.ne.s32.totalorder %s81, %s83
      %p90 = scmp.eq.s32.totalorder %s17, 1
      %p91 = por %p89, %p90
      %p92 = scmp.ne.s32.totalorder %s83, %s84
      %p93 = scmp.eq.s32.totalorder %s17, 0
      %p94 = por %p92, %p93
      %p95 = scmp.ne.s32.totalorder %s83, %s84
      %p96 = scmp.eq.s32.totalorder %s18, 1
      %p97 = por %p95, %p96
      %p99 = scmp.ne.s32.totalorder %s84, %s98
      %p100 = scmp.eq.s32.totalorder %s18, 0
      %p101 = por %p99, %p100
      %s102 = ssub.s32 %s19, %s31
      %s103 = ssub.s32 %s20, %s27
      %s104 = sor.u32 %s102, %s103
      %p105 = scmp.eq.s32.totalorder %s104, 0
      %s107 = sadd.s32 %s106, 1
      %s108 = scalar_select %p105, %s106, %s107
      %p111 = pneg %p105
      %p112 = scmp.eq.s32.totalorder %s12, 1
      %p113 = por %p111, %p112
      %p114 = scmp.ne.s32.totalorder %s106, %s109
      %p115 = scmp.eq.s32.totalorder %s12, 0
      %p116 = por %p114, %p115
      %p117 = scmp.ne.s32.totalorder %s106, %s109
      %p118 = scmp.eq.s32.totalorder %s17, 1
      %p119 = por %p117, %p118
      %p120 = scmp.ne.s32.totalorder %s109, %s110
      %p121 = scmp.eq.s32.totalorder %s17, 0
      %p122 = por %p120, %p121
      %p123 = scmp.ne.s32.totalorder %s109, %s110
      %p124 = scmp.eq.s32.totalorder %s18, 1
      %p125 = por %p123, %p124
      %p127 = scmp.ne.s32.totalorder %s110, %s126
      %p128 = scmp.eq.s32.totalorder %s18, 0
      %p129 = por %p127, %p128
      %p130 = scmp.le.s32.totalorder 1, %s12
      %p131 = scmp.lt.s32.totalorder %s12, 3
      %p132 = pnand %p130, %p131
      %p133 = pneg %p132
      // Predicated region
      $region9: #{tpu_custom_call.1} parent=5 // pred_check
        _
      $region10: #{tpu_custom_call.1} parent=5 // pred_check_branch
        %135 = sbr.rel (%p132) target = $region12
      $region11: #{tpu_custom_call.1} parent=5 // pred_region
        %s136 = ssub.s32 %s12, 1
        // Predicated region
        $region13: #{tpu_custom_call.1} parent=11 // pred_check
          %p137 = pneg %p73
        $region14: #{tpu_custom_call.1} parent=11 // pred_check_branch
          %139 = sbr.rel (%p137) target = $region16
        $region15: #{tpu_custom_call.1} parent=11 // pred_region
          _
        $region16: #{tpu_custom_call.1} parent=11 // pred_fallthru
          _
        // Predicated region
        $region17: #{tpu_custom_call.1} parent=11 // pred_check
          %p140 = pneg %p94
        $region18: #{tpu_custom_call.1} parent=11 // pred_check_branch
          %142 = sbr.rel (%p140) target = $region20
        $region19: #{tpu_custom_call.1} parent=11 // pred_region
          _
        $region20: #{tpu_custom_call.1} parent=11 // pred_fallthru
          _
      $region12: #{tpu_custom_call.1} parent=5 // pred_fallthru
        _
      %p143 = scmp.lt.s32.totalorder %s12, 2
      // Predicated region
      $region21: #{tpu_custom_call.1} parent=5 // pred_check
        %p144 = pneg %p143
      $region22: #{tpu_custom_call.1} parent=5 // pred_check_branch
        %146 = sbr.rel (%p144) target = $region24
      $region23: #{tpu_custom_call.1} parent=5 // pred_region
        // Predicated region
        $region25: #{tpu_custom_call.1} parent=23 // pred_check
          %p147 = pneg %p46
        $region26: #{tpu_custom_call.1} parent=23 // pred_check_branch
          %149 = sbr.rel (%p147) target = $region28
        $region27: #{tpu_custom_call.1} parent=23 // pred_region
          %p150 = scmp.lt.s32.totalorder %s19, 1
          %s151 = scalar_select %p150, %s19, 1
          %p152 = scmp.lt.s32.totalorder %s20, 0
          %s153 = scalar_select %p152, %s20, 0
          %s154 = sadd.s32 %s153, %s151
          %s155 = smul.addr %s154, 4
          %s156 = scalar_lea.vmem %s0, %s155
        $region28: #{tpu_custom_call.1} parent=23 // pred_fallthru
          _
      $region24: #{tpu_custom_call.1} parent=5 // pred_fallthru
        _
      %p157 = scmp.le.s32.totalorder 1, %s12
      %p158 = scmp.lt.s32.totalorder %s12, 3
      %p159 = pnand %p157, %p158
      %p160 = pneg %p159
      // Predicated region
      $region29: #{tpu_custom_call.1} parent=5 // pred_check
        _
      $region30: #{tpu_custom_call.1} parent=5 // pred_check_branch
        %162 = sbr.rel (%p159) target = $region32
      $region31: #{tpu_custom_call.1} parent=5 // pred_region
        %s163 = ssub.s32 %s12, 1
        %p164 = scmp.lt.s32.totalorder %s21, 1
        %s165 = scalar_select %p164, %s21, 1
        %p166 = scmp.lt.s32.totalorder %s22, 0
        %s167 = scalar_select %p166, %s22, 0
        %s168 = sadd.s32 %s167, %s165
        %s169 = smul.addr %s168, 4
        %s170 = scalar_lea.vmem %s0, %s169
        %p171 = pneg %p52
        %p172 = pneg %p49
        %p173 = pneg %p73
        %p174 = pneg %p70
        %p175 = pneg %p94
        %p176 = pneg %p91
        %p177 = pneg %p122
        %p178 = pneg %p119
        %s179 = sand.u32 %s109, 1
        %s180 = scalar_lea.sflag [#allocation3], %s179
        %s181 = sand.u32 %s109, 1
        %s182 = smul.addr %s181, 8
        %s183 = scalar_lea.vmem [#allocation2], %s182
        %p184 = scmp.lt.s32.totalorder %s21, 1
        %s185 = scalar_select %p184, %s21, 1
        %p186 = scmp.lt.s32.totalorder %s22, 0
        %s187 = scalar_select %p186, %s22, 0
        %s188 = sadd.s32 %s187, %s185
        %s189 = smul.addr %s188, 4
        %s190 = scalar_lea.vmem %s0, %s189
        %v191 = vld [vmem:[%s1] sm:$0xff]
        %v192 = vld [vmem:[%s2] sm:$0xff]
        %v193 = vld [vmem:[%s2 + $0x8] sm:$0xff]
        %v194 = vld [vmem:[%s190] sm:$0xf]
        %vm195 = vcmask 130048
        %v197 = vsel %vm195, %v194, 0
        %199 = vmatprep.subr.mxu0 0.0
        %200 = vmatpush1.msra.mxu0 %v192
        %201 = vmatprep.subr.mxu0 0.0
        %202 = vmatpush1.msra.mxu0 %v193
        %203 = vmatprep.subr.mxu0 0.0
        %204 = vmatpush1.msra.mxu0 0.0
        %205 = vmatprep.subr.mxu0 0.0
        %206 = vmatpush1.msra.mxu0 0.0
        %207 = vmatprep.subr.mxu0 0.0
        %208 = vmatpush1.msra.mxu0 0.0
        %209 = vmatprep.subr.mxu0 0.0
        %210 = vmatpush1.msra.mxu0 0.0
        %211 = vmatprep.subr.mxu0 0.0
        %212 = vmatpush1.msra.mxu0 0.0
        %213 = vmatprep.subr.mxu0 0.0
        %214 = vmatpush1.msra.mxu0 0.0
        %215 = vmatprep.subr.mxu0 0.0
        %216 = vmatpush1.msra.mxu0 0.0
        %217 = vmatprep.subr.mxu0 0.0
        %218 = vmatpush1.msra.mxu0 0.0
        %219 = vmatprep.subr.mxu0 0.0
        %220 = vmatpush1.msra.mxu0 0.0
        %221 = vmatprep.subr.mxu0 0.0
        %222 = vmatpush1.msra.mxu0 0.0
        %223 = vmatprep.subr.mxu0 0.0
        %224 = vmatpush1.msra.mxu0 0.0
        %225 = vmatprep.subr.mxu0 0.0
        %226 = vmatpush1.msra.mxu0 0.0
        %227 = vmatprep.subr.mxu0 0.0
        %228 = vmatpush1.msra.mxu0 0.0
        %229 = vmatprep.subr.mxu0 0.0
        %230 = vmatpush1.msra.mxu0 0.0
        %231 = vmatprep.subr.mxu0 0.0
        %232 = vmatpush1.msra.mxu0 0.0
        %233 = vmatprep.subr.mxu0 0.0
        %234 = vmatpush1.msra.mxu0 0.0
        %235 = vmatprep.subr.mxu0 0.0
        %236 = vmatpush1.msra.mxu0 0.0
        %237 = vmatprep.subr.mxu0 0.0
        %238 = vmatpush1.msra.mxu0 0.0
        %239 = vmatprep.subr.mxu0 0.0
        %240 = vmatpush1.msra.mxu0 0.0
        %241 = vmatprep.subr.mxu0 0.0
        %242 = vmatpush1.msra.mxu0 0.0
        %243 = vmatprep.subr.mxu0 0.0
        %244 = vmatpush1.msra.mxu0 0.0
        %245 = vmatprep.subr.mxu0 0.0
        %246 = vmatpush1.msra.mxu0 0.0
        %247 = vmatprep.subr.mxu0 0.0
        %248 = vmatpush1.msra.mxu0 0.0
        %249 = vmatprep.subr.mxu0 0.0
        %250 = vmatpush1.msra.mxu0 0.0
        %251 = vmatprep.subr.mxu0 0.0
        %252 = vmatpush1.msra.mxu0 0.0
        %253 = vmatprep.subr.mxu0 0.0
        %254 = vmatpush1.msra.mxu0 0.0
        %255 = vmatprep.subr.mxu0 0.0
        %256 = vmatpush1.msra.mxu0 0.0
        %257 = vmatprep.subr.mxu0 0.0
        %258 = vmatpush1.msra.mxu0 0.0
        %259 = vmatprep.subr.mxu0 0.0
        %260 = vmatpush1.msra.mxu0 0.0
        %261 = vmatprep.subr.mxu0 0.0
        %262 = vmatpush1.msra.mxu0 0.0
        %263 = vmatprep.mubr.f32.mxu0 0.0
        %264 = vmatmul.mubr.f32.gmra.mrb[0].mxu0 %v197
        %v265 = vpop.f32.mrb[0].mxu0
        %v266 = vadd.f32 0.0, %v265
        %v267 = vpop.f32.mrb[0].mxu0
        %268 = vdwg.mxu0
        %vm269 = vcmask 31744
        %v271 = vsel %vm269, %v191, 0
        %vm273 = vcmask 1043456
        %v275 = vsel %vm273, %v266, 0
        %277 = vmatprep.subr.mxu0 0.0
        %278 = vmatpush1.msra.mxu0 %v275
        %279 = vmatprep.subr.mxu0 0.0
        %280 = vmatpush1.msra.mxu0 0.0
        %281 = vmatprep.subr.mxu0 0.0
        %282 = vmatpush1.msra.mxu0 0.0
        %283 = vmatprep.subr.mxu0 0.0
        %284 = vmatpush1.msra.mxu0 0.0
        %285 = vmatprep.subr.mxu0 0.0
        %286 = vmatpush1.msra.mxu0 0.0
        %287 = vmatprep.subr.mxu0 0.0
        %288 = vmatpush1.msra.mxu0 0.0
        %289 = vmatprep.subr.mxu0 0.0
        %290 = vmatpush1.msra.mxu0 0.0
        %291 = vmatprep.subr.mxu0 0.0
        %292 = vmatpush1.msra.mxu0 0.0
        %293 = vmatprep.subr.mxu0 0.0
        %294 = vmatpush1.msra.mxu0 0.0
        %295 = vmatprep.subr.mxu0 0.0
        %296 = vmatpush1.msra.mxu0 0.0
        %297 = vmatprep.subr.mxu0 0.0
        %298 = vmatpush1.msra.mxu0 0.0
        %299 = vmatprep.subr.mxu0 0.0
        %300 = vmatpush1.msra.mxu0 0.0
        %301 = vmatprep.subr.mxu0 0.0
        %302 = vmatpush1.msra.mxu0 0.0
        %303 = vmatprep.subr.mxu0 0.0
        %304 = vmatpush1.msra.mxu0 0.0
        %305 = vmatprep.subr.mxu0 0.0
        %306 = vmatpush1.msra.mxu0 0.0
        %307 = vmatprep.subr.mxu0 0.0
        %308 = vmatpush1.msra.mxu0 0.0
        %309 = vmatprep.subr.mxu0 0.0
        %310 = vmatpush1.msra.mxu0 0.0
        %311 = vmatprep.subr.mxu0 0.0
        %312 = vmatpush1.msra.mxu0 0.0
        %313 = vmatprep.subr.mxu0 0.0
        %314 = vmatpush1.msra.mxu0 0.0
        %315 = vmatprep.subr.mxu0 0.0
        %316 = vmatpush1.msra.mxu0 0.0
        %317 = vmatprep.subr.mxu0 0.0
        %318 = vmatpush1.msra.mxu0 0.0
        %319 = vmatprep.subr.mxu0 0.0
        %320 = vmatpush1.msra.mxu0 0.0
        %321 = vmatprep.subr.mxu0 0.0
        %322 = vmatpush1.msra.mxu0 0.0
        %323 = vmatprep.subr.mxu0 0.0
        %324 = vmatpush1.msra.mxu0 0.0
        %325 = vmatprep.subr.mxu0 0.0
        %326 = vmatpush1.msra.mxu0 0.0
        %327 = vmatprep.subr.mxu0 0.0
        %328 = vmatpush1.msra.mxu0 0.0
        %329 = vmatprep.subr.mxu0 0.0
        %330 = vmatpush1.msra.mxu0 0.0
        %331 = vmatprep.subr.mxu0 0.0
        %332 = vmatpush1.msra.mxu0 0.0
        %333 = vmatprep.subr.mxu0 0.0
        %334 = vmatpush1.msra.mxu0 0.0
        %335 = vmatprep.subr.mxu0 0.0
        %336 = vmatpush1.msra.mxu0 0.0
        %337 = vmatprep.subr.mxu0 0.0
        %338 = vmatpush1.msra.mxu0 0.0
        %339 = vmatprep.subr.mxu0 0.0
        %340 = vmatpush1.msra.mxu0 0.0
        %341 = vmatprep.mubr.f32.mxu0 0.0
        %342 = vmatmul.mubr.f32.gmra.mrb[0].mxu0 %v271
        %v343 = vpop.f32.mrb[0].mxu0
        %v344 = vadd.f32 0.0, %v343
        %v345 = vpop.f32.mrb[0].mxu0
        %346 = vdwg.mxu0
        %vm347 = vcmask 64512
        %348 = vst.msk [vmem:[%s183] sm:$0xff] %vm347, %v344
        %s349 = sand.u32 %s109, 1
        %s350 = scalar_lea.sflag [#allocation3], %s349
        %s351 = sand.u32 %s109, 1
        %s352 = smul.addr %s351, 8
        %s353 = scalar_lea.vmem [#allocation2], %s352
        // Predicated region
        $region33: #{tpu_custom_call.1} parent=31 // pred_check
          %p354 = pneg %p119
        $region34: #{tpu_custom_call.1} parent=31 // pred_check_branch
          %356 = sbr.rel (%p354) target = $region36
        $region35: #{tpu_custom_call.1} parent=31 // pred_region
          %s358 = ssub.s32 128, 128
          %359 = vsyncadd %s350, %s358
          %s360 = sadd.s32 %s22, %s21
          %s361 = smul.addr %s360, 128
          %s362 = scalar_lea.hbm %s3, %s361
          %s364 = sshll.u32 %s353, 4
          %s365 = int_to_ptr.vmem [resolvable:$true] %s364
          %367 = dma.vmem_to_hbm [thread:$0]  %s365, 128, %s362, %s350
        $region36: #{tpu_custom_call.1} parent=31 // pred_fallthru
          _
      $region32: #{tpu_custom_call.1} parent=5 // pred_fallthru
        _
      %p368 = scmp.le.s32.totalorder 2, %s12
      // Predicated region
      $region37: #{tpu_custom_call.1} parent=5 // pred_check
        %p369 = pneg %p368
      $region38: #{tpu_custom_call.1} parent=5 // pred_check_branch
        %371 = sbr.rel (%p369) target = $region40
      $region39: #{tpu_custom_call.1} parent=5 // pred_region
        %s372 = ssub.s32 %s12, 2
        // Predicated region
        $region41: #{tpu_custom_call.1} parent=39 // pred_check
          %p373 = pneg %p125
        $region42: #{tpu_custom_call.1} parent=39 // pred_check_branch
          %375 = sbr.rel (%p373) target = $region44
        $region43: #{tpu_custom_call.1} parent=39 // pred_region
          %s376 = sand.u32 %s110, 1
          %s377 = scalar_lea.sflag [#allocation3], %s376
          %s378 = sand.u32 %s110, 1
          %s379 = smul.addr %s378, 8
          %s380 = scalar_lea.vmem [#allocation2], %s379
          %381 = dma.done %s377, 128
        $region44: #{tpu_custom_call.1} parent=39 // pred_fallthru
          _
      $region40: #{tpu_custom_call.1} parent=5 // pred_fallthru
        _
    $region6: #{tpu_custom_call.1} parent=1 // loop_footer
      %s16 = sadd.s32 1, %s12
    $region7: #{tpu_custom_call.1} parent=1 // loop_footer_branch
      %11 = sbr.rel target = $region3
    $region8: #{tpu_custom_call.1} parent=1 // loop_exit
      _
    %382 = vsyncpa [#allocation3], 1
    %s383 = scalar_lea.sflag [#allocation3], 1
    %384 = vsyncpa %s383, 1

</llo_original>
